<compile_context>
chip_gen: v7x
topology: tpu7x:2x2x1
jax: 0.10.0
libtpu: 0.0.40
codegen_flags: <defaults>
</compile_context>

<pallas_src>
import jax
import jax.numpy as jnp
from jax.experimental import pallas as pl
from jax.experimental.pallas import tpu as pltpu


_LANES = 128                 # samples packed per row (lane width)
_FEATS = 5                   # fc2 input features
_ROW_W = _LANES * _FEATS     # 640 contiguous f32 per packed row

# VMEM per grid step (f32, double-buffered):
#   x    : TM * 640 * 4 B * 2
#   out  : TM * 128 * 4 B * 2
#   Wsel : 640 * 128 * 4 B * 2   (allocated x2, DMA'd once: constant index_map)
# TM = 2048  ->  ~12.6 MiB total.
_TM_MAX = 2048
_TM_MIN = 512                # >= ~1.3 MiB of x per step -> per-step overhead small


def _round_up(n, m):
    return ((n + m - 1) // m) * m


def _choose_tile_rows(m_rows):
    """Pick TM (rows of 128 samples) for an (m_rows, 640) packed input."""
    if m_rows <= _TM_MIN:
        return m_rows                       # single full-extent block (always legal)
    tm = _round_up(-(-m_rows // 8), 8)      # aim for ~8 grid steps (v7x: both TCs)
    return max(_TM_MIN, min(_TM_MAX, tm))


def net2_kernel(w_ref, b_ref, x_ref, o_ref):
    # w_ref: (640, 128) selector matrix, resident in VMEM across the grid
    # b_ref: (1,)       SMEM scalar bias
    # x_ref: (TM, 640)  tile: row m = 128 samples x 5 features, contiguous
    # o_ref: (TM, 128)  dense output tile (sample j of packed row -> lane j)
    t = jnp.tanh(x_ref[...])                                          # EUP
    y = jnp.dot(t, w_ref[...], preferred_element_type=jnp.float32)    # MXU
    o_ref[...] = (y + b_ref[0]).astype(o_ref.dtype)


def _net2_pallas(x, w2, b2, *, tm=None):
    B, F = x.shape
    assert F == _FEATS and w2.shape == (1, _FEATS) and b2.shape == (1,)

    Bp = _round_up(B, _LANES)
    if Bp != B:
        # Only misaligned batches pay a pad copy; aligned ones reshape for free.
        # Padded rows are zeros -> tanh(0)*w + b, written then sliced away.
        x = jnp.pad(x, ((0, Bp - B), (0, 0)))
    M = Bp // _LANES
    x2d = x.reshape(M, _ROW_W)        # free view: (Bp,5) row-major == (M,640)

    if tm is None:
        tm = _choose_tile_rows(M)

    # Constant selector matrix: W_sel[j*5+f, k] = w2[0,f] if j == k else 0, so
    # tanh(x_tile) @ W_sel  ==  per-sample  sum_f tanh(x[s,f]) * w2[0,f].
    eye = jnp.eye(_LANES, dtype=jnp.float32)                         # (128,128)
    w_sel = (eye[:, None, :] *
             w2.reshape(1, _FEATS, 1).astype(jnp.float32)).reshape(_ROW_W, _LANES)
    b_vec = b2.reshape(1).astype(jnp.float32)

    out2d = pl.pallas_call(
        net2_kernel,
        out_shape=jax.ShapeDtypeStruct((M, _LANES), x.dtype),
        grid=(pl.cdiv(M, tm),),                      # partial last block is masked
        in_specs=[
            pl.BlockSpec((_ROW_W, _LANES), lambda i: (0, 0)),     # W_sel: resident
            pl.BlockSpec(memory_space=pltpu.MemorySpace.SMEM),    # bias: SMEM scalar
            pl.BlockSpec((tm, _ROW_W), lambda i: (i, 0)),         # x: tiled, dbl-buffered
        ],
        out_specs=pl.BlockSpec((tm, _LANES), lambda i: (i, 0)),   # dense output slab
        compiler_params=pltpu.CompilerParams(
            dimension_semantics=("parallel",),
            vmem_limit_bytes=32 * 1024 * 1024,
        ),
    )(w_sel, b_vec, x2d)

    # (M,128) row-major == (Bp,) flat; overhang rows (pad / OOB garbage) dropped.
    return out2d.reshape(Bp, 1)[:B]


def net2_forward(x, w2, b2, *, use_pallas=None, tm=None):
    """x: (B, 5) float32; w2: (1, 5); b2: (1,). Returns (B, 1) = tanh(x) @ w2.T + b2."""
    B = x.shape[0]
    if use_pallas is None:
        # Both paths are now a single HBM pass; below ~1K rows the pallas_call
        # launch + fixed per-step cost still dominates, so plain XLA wins there.
        use_pallas = B >= 1024
    if not use_pallas:
        return jnp.tanh(x) @ w2.T + b2
    return _net2_pallas(x, w2, b2, tm=tm)


def init_params(key, dim):
    """Deterministic init mirroring the module's parameter shapes."""
    k1, k2, k3, k4 = jax.random.split(key, 4)
    # fc1 (dim -> 5): defined by the module but unused in forward().
    fc1_w = jax.random.uniform(k1, (5, dim), jnp.float32, -1.0, 1.0) / jnp.sqrt(dim)
    fc1_b = jax.random.uniform(k2, (5,), jnp.float32, -1.0, 1.0) / jnp.sqrt(dim)
    # fc2 (5 -> 1): used in forward().
    fc2_w = jax.random.uniform(k3, (1, 5), jnp.float32, -1.0, 1.0) / jnp.sqrt(5.0)
    fc2_b = jax.random.uniform(k4, (1,), jnp.float32, -1.0, 1.0) / jnp.sqrt(5.0)
    return fc1_w, fc1_b, fc2_w, fc2_b


if __name__ == "__main__":
    key = jax.random.PRNGKey(0)
    dim = 32                              # fc1 input dim (fc1 unused in forward)
    kx1, kx2, kx3, kp = jax.random.split(key, 4)
    fc1_w, fc1_b, fc2_w, fc2_b = init_params(kp, dim)

    def ref_fwd(xv):
        return jnp.tanh(xv) @ fc2_w.T + fc2_b

    # 1) tiny batch (B < 128: pads to one 128-sample packed row, single step)
    x1 = jax.random.normal(kx1, (8, 5), jnp.float32)
    o1 = jax.block_until_ready(net2_forward(x1, fc2_w, fc2_b, use_pallas=True))
    assert o1.shape == (8, 1)
    assert jnp.allclose(o1, ref_fwd(x1), atol=1e-5, rtol=1e-5)

    # 2) 128-aligned batch: no pad, pure free-reshape path
    x2 = jax.random.normal(kx2, (256, 5), jnp.float32)
    o2 = jax.block_until_ready(net2_forward(x2, fc2_w, fc2_b, use_pallas=True))
    assert o2.shape == (256, 1)
    assert jnp.allclose(o2, ref_fwd(x2), atol=1e-5, rtol=1e-5)

    # 3) misaligned batch + forced small tile: multi-step parallel grid with a
    #    partial last block (exercises Pallas OOB masking + batch padding)
    x3 = jax.random.normal(kx3, (2900, 5), jnp.float32)
    o3 = jax.block_until_ready(net2_forward(x3, fc2_w, fc2_b, use_pallas=True, tm=8))
    assert o3.shape == (2900, 1)
    assert jnp.allclose(o3, ref_fwd(x3), atol=1e-5, rtol=1e-5)

    print("KERNEL_OK")
</pallas_src>

<mosaic_0001>
module attributes {stable_mosaic.version = 11 : i64} {
  func.func @net2_kernel(%arg0: i32, %arg1: memref<640x128xf32, #tpu.memory_space<vmem>>, %arg2: memref<1xf32, #tpu.memory_space<smem>>, %arg3: memref<1x640xf32, #tpu.memory_space<vmem>>, %arg4: memref<1x128xf32, #tpu.memory_space<vmem>>) attributes {dimension_semantics = [#tpu.dimension_semantics<parallel>], iteration_bounds = array<i64: 1>, scalar_prefetch = 0 : i64, scratch_operands = 0 : i64, tpu.core_type = #tpu.core_type<tc>, window_params = [{pipeline_mode = #tpu.pipeline_mode<synchronous>, transform_indices = @transform_0, window_bounds = array<i64: 640, 128>}, {transform_indices = @transform_1, window_bounds = array<i64: 1>}, {transform_indices = @transform_2, window_bounds = array<i64: 1, 640>}, {transform_indices = @transform_3, window_bounds = array<i64: 1, 128>}]} {
    %c0 = arith.constant 0 : index
    %c0_0 = arith.constant 0 : index
    %0 = vector.load %arg3[%c0, %c0_0] : memref<1x640xf32, #tpu.memory_space<vmem>>, vector<1x640xf32>
    %1 = math.tanh %0 : vector<1x640xf32>
    %c0_1 = arith.constant 0 : index
    %c0_2 = arith.constant 0 : index
    %2 = vector.load %arg1[%c0_1, %c0_2] : memref<640x128xf32, #tpu.memory_space<vmem>>, vector<640x128xf32>
    %cst = arith.constant dense<0.000000e+00> : vector<1x128xf32>
    %3 = tpu.matmul %1, %2, %cst {dimension_numbers = #tpu.dot_dimension_numbers<[1], [0], [0], [1], [0, 0, 1, 1], [], []>} : vector<1x640xf32>, vector<640x128xf32>, vector<1x128xf32> -> vector<1x128xf32>
    %c0_3 = arith.constant 0 : index
    %4 = memref.load %arg2[%c0_3] : memref<1xf32, #tpu.memory_space<smem>>
    %5 = vector.broadcast %4 : f32 to vector<1x128xf32>
    %6 = arith.addf %3, %5 : vector<1x128xf32>
    %c0_4 = arith.constant 0 : index
    %c0_5 = arith.constant 0 : index
    %7 = vector.load %arg4[%c0_4, %c0_5] : memref<1x128xf32, #tpu.memory_space<vmem>>, vector<1x128xf32>
    tpu.vector_store %arg4[%c0_4, %c0_5], %6 {strides = array<i32>} : memref<1x128xf32, #tpu.memory_space<vmem>>, vector<1x128xf32>,
    return
  }
  func.func @transform_0(%arg0: i32) -> (i32, i32) {
    %c0_i32 = arith.constant 0 : i32
    %c0_i32_0 = arith.constant 0 : i32
    %c0_i32_1 = arith.constant 0 : i32
    return %c0_i32, %c0_i32_0 : i32, i32
  }
  func.func @transform_1(%arg0: i32) -> i32 {
    %c0_i32 = arith.constant 0 : i32
    %c0_i32_0 = arith.constant 0 : i32
    return %c0_i32 : i32
  }
  func.func @transform_2(%arg0: i32) -> (i32, i32) {
    %c0_i32 = arith.constant 0 : i32
    %c0_i32_0 = arith.constant 0 : i32
    return %arg0, %c0_i32 : i32, i32
  }
  func.func @transform_3(%arg0: i32) -> (i32, i32) {
    %c0_i32 = arith.constant 0 : i32
    %c0_i32_0 = arith.constant 0 : i32
    return %arg0, %c0_i32 : i32, i32
  }
}

</mosaic_0001>

<llo_original>
// kernel: tpu_custom_call.1
$region0: #{tpu_custom_call.1}
  #allocation0 [shape = 'u32[]', space=smem, size = 0x4, offset = 0x4, fixed_abs, tag = 'smem constant byte address 0x4 - core index']
  #allocation1 [shape = 'u32[144,128]{1,0:T(1,128)}', space=vmem, size = 0x12000, scoped, tag = 'internal scratch']
  #allocation2 [shape = 'f32[1]{0:T(128)S(6)}', space=smem, size = 0x200, scoped, tag = 'scoped memory for tpu_custom_call.1']
  %s0 = inlined_call_operand.hbm [shape: f32[640,128], index: 0, kind: input, shape index: {}]
  %s1 = inlined_call_operand.<no memory space> [shape: f32[1], index: 1, kind: input, shape index: {}]
  %s2 = inlined_call_operand.vmem [shape: f32[1,640], index: 2, kind: input, shape index: {}]
  %s3 = inlined_call_operand.hbm [shape: f32[1,128], index: 3, kind: output, shape index: {}]
  %s4 = sld [smem:[#allocation0]]
  $region26: #{tpu_custom_call.1} parent=0
    _
  %s6 = ssub.s32 1, %s4
  %s7 = scalar_select 0, %s6, %s4
  %8 = sst [smem:[#allocation2]] %s1
  $region1: #{tpu_custom_call.1} parent=0
    #allocation3 [shape = 'u8[327680]{0}', space=vmem, size = 0x50000, scoped, tag = 'input window, operand 0, single buffered']
    #allocation4 [shape = 's32[1]{0}', space=sflag, size = 0x4, scoped, tag = 'scoped memory for tpu_custom_call.1']
    #allocation5 [shape = 's32[1]{0}', space=sflag, size = 0x4, scoped, tag = 'scoped memory for tpu_custom_call.1']
    #allocation6 [shape = 'u8[512]{0}', space=vmem, size = 0x400, scoped, tag = 'output window, operand 0, single buffered']
    %9 = vsyncpa [#allocation4], 0
    %10 = vsyncpa [#allocation5], 0
    // Predicated region
    $region2: #{tpu_custom_call.1} parent=1 // pred_check
      _
    $region3: #{tpu_custom_call.1} parent=1 // pred_check_branch
      %12 = sbr.rel (0) target = $region5
    $region4: #{tpu_custom_call.1} parent=1 // pred_region
      %s14 = ssub.s32 10240, 10240
      %15 = vsyncadd [#allocation4], %s14
      %s16 = sshll.u32 [#allocation3], 4
      %s17 = int_to_ptr.vmem [resolvable:$true] %s16
      %22 = dma.hbm_to_vmem [thread:$0]  %s0, 10240, %s17, [#allocation4], 128, 128, 8
    $region5: #{tpu_custom_call.1} parent=1 // pred_fallthru
      _
    // Predicated region
    $region6: #{tpu_custom_call.1} parent=1 // pred_check
      _
    $region7: #{tpu_custom_call.1} parent=1 // pred_check_branch
      %24 = sbr.rel (0) target = $region9
    $region8: #{tpu_custom_call.1} parent=1 // pred_region
      _
    $region9: #{tpu_custom_call.1} parent=1 // pred_fallthru
      _
    // Predicated region
    $region10: #{tpu_custom_call.1} parent=1 // pred_check
      _
    $region11: #{tpu_custom_call.1} parent=1 // pred_check_branch
      %26 = sbr.rel (0) target = $region13
    $region12: #{tpu_custom_call.1} parent=1 // pred_region
      _
    $region13: #{tpu_custom_call.1} parent=1 // pred_fallthru
      _
    // Predicated region
    $region14: #{tpu_custom_call.1} parent=1 // pred_check
      _
    $region15: #{tpu_custom_call.1} parent=1 // pred_check_branch
      %28 = sbr.rel (0) target = $region17
    $region16: #{tpu_custom_call.1} parent=1 // pred_region
      %29 = dma.done [#allocation4], 10240
    $region17: #{tpu_custom_call.1} parent=1 // pred_fallthru
      _
    %v30 = vld [vmem:[%s2] sm:$0x1f]
    %v31 = vtanh.pop %v30
    %v32 = vld [vmem:[#allocation3] sm:$0xff]
    %v33 = vld [vmem:[#allocation3 + $0x8] sm:$0xff]
    %v34 = vld [vmem:[#allocation3 + $0x10] sm:$0xff]
    %v35 = vld [vmem:[#allocation3 + $0x18] sm:$0xff]
    %v36 = vld [vmem:[#allocation3 + $0x20] sm:$0xff]
    %v37 = vld [vmem:[#allocation3 + $0x28] sm:$0xff]
    %v38 = vld [vmem:[#allocation3 + $0x30] sm:$0xff]
    %v39 = vld [vmem:[#allocation3 + $0x38] sm:$0xff]
    %v40 = vld [vmem:[#allocation3 + $0x40] sm:$0xff]
    %v41 = vld [vmem:[#allocation3 + $0x48] sm:$0xff]
    %v42 = vld [vmem:[#allocation3 + $0x50] sm:$0xff]
    %v43 = vld [vmem:[#allocation3 + $0x58] sm:$0xff]
    %v44 = vld [vmem:[#allocation3 + $0x60] sm:$0xff]
    %v45 = vld [vmem:[#allocation3 + $0x68] sm:$0xff]
    %v46 = vld [vmem:[#allocation3 + $0x70] sm:$0xff]
    %v47 = vld [vmem:[#allocation3 + $0x78] sm:$0xff]
    %v48 = vld [vmem:[#allocation3 + $0x80] sm:$0xff]
    %v49 = vld [vmem:[#allocation3 + $0x88] sm:$0xff]
    %v50 = vld [vmem:[#allocation3 + $0x90] sm:$0xff]
    %v51 = vld [vmem:[#allocation3 + $0x98] sm:$0xff]
    %v52 = vld [vmem:[#allocation3 + $0xa0] sm:$0xff]
    %v53 = vld [vmem:[#allocation3 + $0xa8] sm:$0xff]
    %v54 = vld [vmem:[#allocation3 + $0xb0] sm:$0xff]
    %v55 = vld [vmem:[#allocation3 + $0xb8] sm:$0xff]
    %v56 = vld [vmem:[#allocation3 + $0xc0] sm:$0xff]
    %v57 = vld [vmem:[#allocation3 + $0xc8] sm:$0xff]
    %v58 = vld [vmem:[#allocation3 + $0xd0] sm:$0xff]
    %v59 = vld [vmem:[#allocation3 + $0xd8] sm:$0xff]
    %v60 = vld [vmem:[#allocation3 + $0xe0] sm:$0xff]
    %v61 = vld [vmem:[#allocation3 + $0xe8] sm:$0xff]
    %v62 = vld [vmem:[#allocation3 + $0xf0] sm:$0xff]
    %v63 = vld [vmem:[#allocation3 + $0xf8] sm:$0xff]
    %v64 = vld [vmem:[#allocation3 + $0x100] sm:$0xff]
    %v65 = vld [vmem:[#allocation3 + $0x108] sm:$0xff]
    %v66 = vld [vmem:[#allocation3 + $0x110] sm:$0xff]
    %v67 = vld [vmem:[#allocation3 + $0x118] sm:$0xff]
    %v68 = vld [vmem:[#allocation3 + $0x120] sm:$0xff]
    %v69 = vld [vmem:[#allocation3 + $0x128] sm:$0xff]
    %v70 = vld [vmem:[#allocation3 + $0x130] sm:$0xff]
    %v71 = vld [vmem:[#allocation3 + $0x138] sm:$0xff]
    %v72 = vld [vmem:[#allocation3 + $0x140] sm:$0xff]
    %v73 = vld [vmem:[#allocation3 + $0x148] sm:$0xff]
    %v74 = vld [vmem:[#allocation3 + $0x150] sm:$0xff]
    %v75 = vld [vmem:[#allocation3 + $0x158] sm:$0xff]
    %v76 = vld [vmem:[#allocation3 + $0x160] sm:$0xff]
    %v77 = vld [vmem:[#allocation3 + $0x168] sm:$0xff]
    %v78 = vld [vmem:[#allocation3 + $0x170] sm:$0xff]
    %v79 = vld [vmem:[#allocation3 + $0x178] sm:$0xff]
    %v80 = vld [vmem:[#allocation3 + $0x180] sm:$0xff]
    %v81 = vld [vmem:[#allocation3 + $0x188] sm:$0xff]
    %v82 = vld [vmem:[#allocation3 + $0x190] sm:$0xff]
    %v83 = vld [vmem:[#allocation3 + $0x198] sm:$0xff]
    %v84 = vld [vmem:[#allocation3 + $0x1a0] sm:$0xff]
    %v85 = vld [vmem:[#allocation3 + $0x1a8] sm:$0xff]
    %v86 = vld [vmem:[#allocation3 + $0x1b0] sm:$0xff]
    %v87 = vld [vmem:[#allocation3 + $0x1b8] sm:$0xff]
    %v88 = vld [vmem:[#allocation3 + $0x1c0] sm:$0xff]
    %v89 = vld [vmem:[#allocation3 + $0x1c8] sm:$0xff]
    %v90 = vld [vmem:[#allocation3 + $0x1d0] sm:$0xff]
    %v91 = vld [vmem:[#allocation3 + $0x1d8] sm:$0xff]
    %v92 = vld [vmem:[#allocation3 + $0x1e0] sm:$0xff]
    %v93 = vld [vmem:[#allocation3 + $0x1e8] sm:$0xff]
    %v94 = vld [vmem:[#allocation3 + $0x1f0] sm:$0xff]
    %v95 = vld [vmem:[#allocation3 + $0x1f8] sm:$0xff]
    %v96 = vld [vmem:[#allocation3 + $0x200] sm:$0xff]
    %v97 = vld [vmem:[#allocation3 + $0x208] sm:$0xff]
    %v98 = vld [vmem:[#allocation3 + $0x210] sm:$0xff]
    %v99 = vld [vmem:[#allocation3 + $0x218] sm:$0xff]
    %v100 = vld [vmem:[#allocation3 + $0x220] sm:$0xff]
    %v101 = vld [vmem:[#allocation3 + $0x228] sm:$0xff]
    %v102 = vld [vmem:[#allocation3 + $0x230] sm:$0xff]
    %v103 = vld [vmem:[#allocation3 + $0x238] sm:$0xff]
    %v104 = vld [vmem:[#allocation3 + $0x240] sm:$0xff]
    %v105 = vld [vmem:[#allocation3 + $0x248] sm:$0xff]
    %v106 = vld [vmem:[#allocation3 + $0x250] sm:$0xff]
    %v107 = vld [vmem:[#allocation3 + $0x258] sm:$0xff]
    %v108 = vld [vmem:[#allocation3 + $0x260] sm:$0xff]
    %v109 = vld [vmem:[#allocation3 + $0x268] sm:$0xff]
    %v110 = vld [vmem:[#allocation3 + $0x270] sm:$0xff]
    %v111 = vld [vmem:[#allocation3 + $0x278] sm:$0xff]
    %s112 = sld [smem:[#allocation2]]
    %v113 = vstv %s112
    %v115 = vlaneseq
    %v116 = vshrl.u32 %v115, 7
    %v117 = vsub.s32 0, %v116
    %v118 = vrot.slane %v31, %v117
    %v119 = vlaneseq
    %v120 = vshrl.u32 %v119, 7
    %v121 = vsub.s32 1, %v120
    %v122 = vrot.slane %v31, %v121
    %v123 = vlaneseq
    %v124 = vshrl.u32 %v123, 7
    %v125 = vsub.s32 2, %v124
    %v126 = vrot.slane %v31, %v125
    %v127 = vlaneseq
    %v128 = vshrl.u32 %v127, 7
    %v129 = vsub.s32 3, %v128
    %v130 = vrot.slane %v31, %v129
    %v131 = vlaneseq
    %v132 = vshrl.u32 %v131, 7
    %v133 = vsub.s32 4, %v132
    %v134 = vrot.slane %v31, %v133
    %140 = vmatprep.subr.mxu0 0.0
    %141 = vmatpush1.msra.mxu0 %v32
    %142 = vmatprep.subr.mxu0 0.0
    %143 = vmatpush1.msra.mxu0 %v33
    %144 = vmatprep.subr.mxu0 0.0
    %145 = vmatpush1.msra.mxu0 %v34
    %146 = vmatprep.subr.mxu0 0.0
    %147 = vmatpush1.msra.mxu0 %v35
    %148 = vmatprep.subr.mxu0 0.0
    %149 = vmatpush1.msra.mxu0 %v36
    %150 = vmatprep.subr.mxu0 0.0
    %151 = vmatpush1.msra.mxu0 %v37
    %152 = vmatprep.subr.mxu0 0.0
    %153 = vmatpush1.msra.mxu0 %v38
    %154 = vmatprep.subr.mxu0 0.0
    %155 = vmatpush1.msra.mxu0 %v39
    %156 = vmatprep.subr.mxu0 0.0
    %157 = vmatpush1.msra.mxu0 %v40
    %158 = vmatprep.subr.mxu0 0.0
    %159 = vmatpush1.msra.mxu0 %v41
    %160 = vmatprep.subr.mxu0 0.0
    %161 = vmatpush1.msra.mxu0 %v42
    %162 = vmatprep.subr.mxu0 0.0
    %163 = vmatpush1.msra.mxu0 %v43
    %164 = vmatprep.subr.mxu0 0.0
    %165 = vmatpush1.msra.mxu0 %v44
    %166 = vmatprep.subr.mxu0 0.0
    %167 = vmatpush1.msra.mxu0 %v45
    %168 = vmatprep.subr.mxu0 0.0
    %169 = vmatpush1.msra.mxu0 %v46
    %170 = vmatprep.subr.mxu0 0.0
    %171 = vmatpush1.msra.mxu0 %v47
    %172 = vmatprep.subr.mxu0 0.0
    %173 = vmatpush1.msra.mxu0 %v48
    %174 = vmatprep.subr.mxu0 0.0
    %175 = vmatpush1.msra.mxu0 %v49
    %176 = vmatprep.subr.mxu0 0.0
    %177 = vmatpush1.msra.mxu0 %v50
    %178 = vmatprep.subr.mxu0 0.0
    %179 = vmatpush1.msra.mxu0 %v51
    %180 = vmatprep.subr.mxu0 0.0
    %181 = vmatpush1.msra.mxu0 %v52
    %182 = vmatprep.subr.mxu0 0.0
    %183 = vmatpush1.msra.mxu0 %v53
    %184 = vmatprep.subr.mxu0 0.0
    %185 = vmatpush1.msra.mxu0 %v54
    %186 = vmatprep.subr.mxu0 0.0
    %187 = vmatpush1.msra.mxu0 %v55
    %188 = vmatprep.subr.mxu0 0.0
    %189 = vmatpush1.msra.mxu0 %v56
    %190 = vmatprep.subr.mxu0 0.0
    %191 = vmatpush1.msra.mxu0 %v57
    %192 = vmatprep.subr.mxu0 0.0
    %193 = vmatpush1.msra.mxu0 %v58
    %194 = vmatprep.subr.mxu0 0.0
    %195 = vmatpush1.msra.mxu0 %v59
    %196 = vmatprep.subr.mxu0 0.0
    %197 = vmatpush1.msra.mxu0 %v60
    %198 = vmatprep.subr.mxu0 0.0
    %199 = vmatpush1.msra.mxu0 %v61
    %200 = vmatprep.subr.mxu0 0.0
    %201 = vmatpush1.msra.mxu0 %v62
    %202 = vmatprep.subr.mxu0 0.0
    %203 = vmatpush1.msra.mxu0 %v63
    %204 = vmatprep.mubr.f32.mxu0 %v122
    %205 = vmatmul.mubr.f32.gmra.mrb[0].mxu0 %v118
    %v206 = vpop.f32.mrb[0].mxu0
    %v207 = vadd.f32 %v113, %v206
    %v208 = vpop.f32.mrb[0].mxu0
    %209 = vdwg.mxu0
    %210 = vmatprep.subr.mxu0 0.0
    %211 = vmatpush1.msra.mxu0 %v64
    %212 = vmatprep.subr.mxu0 0.0
    %213 = vmatpush1.msra.mxu0 %v65
    %214 = vmatprep.subr.mxu0 0.0
    %215 = vmatpush1.msra.mxu0 %v66
    %216 = vmatprep.subr.mxu0 0.0
    %217 = vmatpush1.msra.mxu0 %v67
    %218 = vmatprep.subr.mxu0 0.0
    %219 = vmatpush1.msra.mxu0 %v68
    %220 = vmatprep.subr.mxu0 0.0
    %221 = vmatpush1.msra.mxu0 %v69
    %222 = vmatprep.subr.mxu0 0.0
    %223 = vmatpush1.msra.mxu0 %v70
    %224 = vmatprep.subr.mxu0 0.0
    %225 = vmatpush1.msra.mxu0 %v71
    %226 = vmatprep.subr.mxu0 0.0
    %227 = vmatpush1.msra.mxu0 %v72
    %228 = vmatprep.subr.mxu0 0.0
    %229 = vmatpush1.msra.mxu0 %v73
    %230 = vmatprep.subr.mxu0 0.0
    %231 = vmatpush1.msra.mxu0 %v74
    %232 = vmatprep.subr.mxu0 0.0
    %233 = vmatpush1.msra.mxu0 %v75
    %234 = vmatprep.subr.mxu0 0.0
    %235 = vmatpush1.msra.mxu0 %v76
    %236 = vmatprep.subr.mxu0 0.0
    %237 = vmatpush1.msra.mxu0 %v77
    %238 = vmatprep.subr.mxu0 0.0
    %239 = vmatpush1.msra.mxu0 %v78
    %240 = vmatprep.subr.mxu0 0.0
    %241 = vmatpush1.msra.mxu0 %v79
    %242 = vmatprep.subr.mxu0 0.0
    %243 = vmatpush1.msra.mxu0 %v80
    %244 = vmatprep.subr.mxu0 0.0
    %245 = vmatpush1.msra.mxu0 %v81
    %246 = vmatprep.subr.mxu0 0.0
    %247 = vmatpush1.msra.mxu0 %v82
    %248 = vmatprep.subr.mxu0 0.0
    %249 = vmatpush1.msra.mxu0 %v83
    %250 = vmatprep.subr.mxu0 0.0
    %251 = vmatpush1.msra.mxu0 %v84
    %252 = vmatprep.subr.mxu0 0.0
    %253 = vmatpush1.msra.mxu0 %v85
    %254 = vmatprep.subr.mxu0 0.0
    %255 = vmatpush1.msra.mxu0 %v86
    %256 = vmatprep.subr.mxu0 0.0
    %257 = vmatpush1.msra.mxu0 %v87
    %258 = vmatprep.subr.mxu0 0.0
    %259 = vmatpush1.msra.mxu0 %v88
    %260 = vmatprep.subr.mxu0 0.0
    %261 = vmatpush1.msra.mxu0 %v89
    %262 = vmatprep.subr.mxu0 0.0
    %263 = vmatpush1.msra.mxu0 %v90
    %264 = vmatprep.subr.mxu0 0.0
    %265 = vmatpush1.msra.mxu0 %v91
    %266 = vmatprep.subr.mxu0 0.0
    %267 = vmatpush1.msra.mxu0 %v92
    %268 = vmatprep.subr.mxu0 0.0
    %269 = vmatpush1.msra.mxu0 %v93
    %270 = vmatprep.subr.mxu0 0.0
    %271 = vmatpush1.msra.mxu0 %v94
    %272 = vmatprep.subr.mxu0 0.0
    %273 = vmatpush1.msra.mxu0 %v95
    %274 = vmatprep.mubr.f32.mxu0 %v130
    %275 = vmatmul.mubr.f32.gmra.mrb[0].mxu0 %v126
    %v276 = vpop.f32.mrb[0].mxu0
    %v277 = vadd.f32 %v207, %v276
    %v278 = vpop.f32.mrb[0].mxu0
    %279 = vdwg.mxu0
    %280 = vmatprep.subr.mxu0 0.0
    %281 = vmatpush1.msra.mxu0 %v96
    %282 = vmatprep.subr.mxu0 0.0
    %283 = vmatpush1.msra.mxu0 %v97
    %284 = vmatprep.subr.mxu0 0.0
    %285 = vmatpush1.msra.mxu0 %v98
    %286 = vmatprep.subr.mxu0 0.0
    %287 = vmatpush1.msra.mxu0 %v99
    %288 = vmatprep.subr.mxu0 0.0
    %289 = vmatpush1.msra.mxu0 %v100
    %290 = vmatprep.subr.mxu0 0.0
    %291 = vmatpush1.msra.mxu0 %v101
    %292 = vmatprep.subr.mxu0 0.0
    %293 = vmatpush1.msra.mxu0 %v102
    %294 = vmatprep.subr.mxu0 0.0
    %295 = vmatpush1.msra.mxu0 %v103
    %296 = vmatprep.subr.mxu0 0.0
    %297 = vmatpush1.msra.mxu0 %v104
    %298 = vmatprep.subr.mxu0 0.0
    %299 = vmatpush1.msra.mxu0 %v105
    %300 = vmatprep.subr.mxu0 0.0
    %301 = vmatpush1.msra.mxu0 %v106
    %302 = vmatprep.subr.mxu0 0.0
    %303 = vmatpush1.msra.mxu0 %v107
    %304 = vmatprep.subr.mxu0 0.0
    %305 = vmatpush1.msra.mxu0 %v108
    %306 = vmatprep.subr.mxu0 0.0
    %307 = vmatpush1.msra.mxu0 %v109
    %308 = vmatprep.subr.mxu0 0.0
    %309 = vmatpush1.msra.mxu0 %v110
    %310 = vmatprep.subr.mxu0 0.0
    %311 = vmatpush1.msra.mxu0 %v111
    %312 = vmatprep.subr.mxu0 0.0
    %313 = vmatpush1.msra.mxu0 0.0
    %314 = vmatprep.subr.mxu0 0.0
    %315 = vmatpush1.msra.mxu0 0.0
    %316 = vmatprep.subr.mxu0 0.0
    %317 = vmatpush1.msra.mxu0 0.0
    %318 = vmatprep.subr.mxu0 0.0
    %319 = vmatpush1.msra.mxu0 0.0
    %320 = vmatprep.subr.mxu0 0.0
    %321 = vmatpush1.msra.mxu0 0.0
    %322 = vmatprep.subr.mxu0 0.0
    %323 = vmatpush1.msra.mxu0 0.0
    %324 = vmatprep.subr.mxu0 0.0
    %325 = vmatpush1.msra.mxu0 0.0
    %326 = vmatprep.subr.mxu0 0.0
    %327 = vmatpush1.msra.mxu0 0.0
    %328 = vmatprep.subr.mxu0 0.0
    %329 = vmatpush1.msra.mxu0 0.0
    %330 = vmatprep.subr.mxu0 0.0
    %331 = vmatpush1.msra.mxu0 0.0
    %332 = vmatprep.subr.mxu0 0.0
    %333 = vmatpush1.msra.mxu0 0.0
    %334 = vmatprep.subr.mxu0 0.0
    %335 = vmatpush1.msra.mxu0 0.0
    %336 = vmatprep.subr.mxu0 0.0
    %337 = vmatpush1.msra.mxu0 0.0
    %338 = vmatprep.subr.mxu0 0.0
    %339 = vmatpush1.msra.mxu0 0.0
    %340 = vmatprep.subr.mxu0 0.0
    %341 = vmatpush1.msra.mxu0 0.0
    %342 = vmatprep.subr.mxu0 0.0
    %343 = vmatpush1.msra.mxu0 0.0
    %344 = vmatprep.mubr.f32.mxu0 0.0
    %345 = vmatmul.mubr.f32.gmra.mrb[0].mxu0 %v134
    %v346 = vpop.f32.mrb[0].mxu0
    %v347 = vadd.f32 %v277, %v346
    %v348 = vpop.f32.mrb[0].mxu0
    %349 = vdwg.mxu0
    %350 = vst [vmem:[#allocation6] sm:$0x1] %v347
    // Predicated region
    $region18: #{tpu_custom_call.1} parent=1 // pred_check
      _
    $region19: #{tpu_custom_call.1} parent=1 // pred_check_branch
      %352 = sbr.rel (0) target = $region21
    $region20: #{tpu_custom_call.1} parent=1 // pred_region
      %s354 = ssub.s32 16, 16
      %355 = vsyncadd [#allocation5], %s354
      %s357 = sshll.u32 [#allocation6], 4
      %s358 = int_to_ptr.vmem [resolvable:$true] %s357
      %360 = dma.vmem_to_hbm [thread:$0]  %s358, 16, %s3, [#allocation5]
    $region21: #{tpu_custom_call.1} parent=1 // pred_fallthru
      _
    // Predicated region
    $region22: #{tpu_custom_call.1} parent=1 // pred_check
      _
    $region23: #{tpu_custom_call.1} parent=1 // pred_check_branch
      %362 = sbr.rel (0) target = $region25
    $region24: #{tpu_custom_call.1} parent=1 // pred_region
      %363 = dma.done [#allocation5], 16
    $region25: #{tpu_custom_call.1} parent=1 // pred_fallthru
      _
    %364 = vsyncpa [#allocation4], 1
    %365 = vsyncpa [#allocation5], 1

</llo_original>
